<compile_context>
chip_gen: v7x
topology: tpu7x:2x2x1
jax: 0.10.0
libtpu: 0.0.40
codegen_flags: <defaults>
</compile_context>

<pallas_src>
import functools

import jax
import jax.numpy as jnp
from jax.experimental import pallas as pl
from jax.experimental.pallas import tpu as pltpu

_LANE = 128
_DROPOUT_P = 0.15
_DROP_SCALE = 1.0 / (1.0 - _DROPOUT_P)
# Largest batch tile. Per-step double-buffered VMEM footprint at 1024 rows:
#   2 * (x 1024x16 + mask 1024x128 + out 1024x128) * 4 B ~= 2.2 MiB
# -> comfortably under every generation's scoped-VMEM default, while keeping
# the grid length >= 2 (megacore sharding on v7x) whenever B > 1024.
_MAX_TILE_B = 1024


def _round_up(x, m):
    return ((x + m - 1) // m) * m


# ----------------------------- kernels --------------------------------------


def _mlp_relu_kernel(x_ref, w1_ref, w2_ref, o_ref):
    # fc1: [tb, in] @ [in, hidden_pad] -> [tb, hidden_pad]  (MXU, f32 acc)
    h = jnp.dot(x_ref[...], w1_ref[...], preferred_element_type=jnp.float32)
    h = jnp.maximum(h, 0.0)  # ReLU (VPU). Dropout is identity in eval mode.
    # fc2: [tb, hidden_pad] @ [hidden_pad, out_pad] -> lane-dense [tb, out_pad]
    o_ref[...] = jnp.dot(
        h, w2_ref[...], preferred_element_type=jnp.float32
    ).astype(o_ref.dtype)


def _mlp_relu_dropout_kernel(x_ref, mask_ref, w1_ref, w2_ref, o_ref):
    h = jnp.dot(x_ref[...], w1_ref[...], preferred_element_type=jnp.float32)
    h = jnp.maximum(h, 0.0)
    # Pre-scaled inverted-dropout mask (0 or 1/(1-p)) -> one vmul per vreg.
    h = h * mask_ref[...]
    o_ref[...] = jnp.dot(
        h, w2_ref[...], preferred_element_type=jnp.float32
    ).astype(o_ref.dtype)


# ----------------------------- pallas wrapper --------------------------------


def _pallas_forward(x, w1_t_pad, w2_t_pad, mask=None):
    """x: [B, in], w1_t_pad: [in, hidden_pad], w2_t_pad: [hidden_pad, out_pad],
    mask (training only): [B, hidden_pad] pre-scaled keep mask."""
    b, in_size = x.shape
    hidden_pad = w1_t_pad.shape[1]
    out_pad = w2_t_pad.shape[1]

    # Biggest tile that fits VMEM comfortably; single tile for small batches.
    tile_b = b if b <= _MAX_TILE_B else _MAX_TILE_B
    grid = (pl.cdiv(b, tile_b),)  # Pallas masks the boundary block -> no pad.

    out_shape = jax.ShapeDtypeStruct((b, out_pad), x.dtype)
    cparams = pltpu.CompilerParams(dimension_semantics=("parallel",))

    itemsize = jnp.dtype(x.dtype).itemsize
    bytes_accessed = (
        x.size + w1_t_pad.size + w2_t_pad.size + b * out_pad
    ) * itemsize
    if mask is not None:
        bytes_accessed += mask.size * itemsize
    cost = pl.CostEstimate(
        flops=2 * b * (in_size * hidden_pad + hidden_pad * out_pad),
        transcendentals=0,
        bytes_accessed=bytes_accessed,
    )

    # Weights use constant index_maps so they stay resident across grid steps.
    x_spec = pl.BlockSpec((tile_b, in_size), lambda i: (i, 0))
    w1_spec = pl.BlockSpec((in_size, hidden_pad), lambda i: (0, 0))
    w2_spec = pl.BlockSpec((hidden_pad, out_pad), lambda i: (0, 0))
    out_spec = pl.BlockSpec((tile_b, out_pad), lambda i: (i, 0))

    if mask is not None:
        mask_spec = pl.BlockSpec((tile_b, hidden_pad), lambda i: (i, 0))
        return pl.pallas_call(
            _mlp_relu_dropout_kernel,
            out_shape=out_shape,
            grid=grid,
            in_specs=[x_spec, mask_spec, w1_spec, w2_spec],
            out_specs=out_spec,
            compiler_params=cparams,
            cost_estimate=cost,
        )(x, mask, w1_t_pad, w2_t_pad)

    return pl.pallas_call(
        _mlp_relu_kernel,
        out_shape=out_shape,
        grid=grid,
        in_specs=[x_spec, w1_spec, w2_spec],
        out_specs=out_spec,
        compiler_params=cparams,
        cost_estimate=cost,
    )(x, w1_t_pad, w2_t_pad)


@functools.partial(jax.jit, static_argnames=("output_size",))
def _forward_eval(x, w1_t_pad, w2_t_pad, *, output_size):
    out = _pallas_forward(x, w1_t_pad, w2_t_pad)
    return out[:, :output_size]


@functools.partial(jax.jit, static_argnames=("output_size",))
def _forward_train(x, w1_t_pad, w2_t_pad, key, *, output_size):
    b = x.shape[0]
    hidden_pad = w1_t_pad.shape[1]
    keep = jax.random.bernoulli(key, 1.0 - _DROPOUT_P, (b, hidden_pad))
    mask = keep.astype(x.dtype) * jnp.asarray(_DROP_SCALE, x.dtype)
    out = _pallas_forward(x, w1_t_pad, w2_t_pad, mask=mask)
    return out[:, :output_size]


# ----------------------------- module port ----------------------------------


class ClassificationGmPallas:
    """JAX/Pallas port of ClassificationGm (two bias-free MLPs + ReLU + dropout)."""

    def __init__(self, input_size, hidden_size, output_size, key):
        self.input_size = input_size
        self.hidden_size = hidden_size
        self.output_size = output_size
        self.hidden_pad = _round_up(hidden_size, _LANE)
        self.out_pad = _round_up(output_size, _LANE)

        k1, k2, k3, k4 = jax.random.split(key, 4)

        def kaiming_t(k, in_f, out_f):
            # kaiming_normal_ (fan_in mode, gain=sqrt(2)), generated directly
            # in transposed [in, out] layout for lane-dense x @ W matmuls.
            std = (2.0 / in_f) ** 0.5
            return std * jax.random.normal(k, (in_f, out_f), jnp.float32)

        # Unpadded transposed weights (kept for reference/numerics checks).
        self.fc1_w_t = kaiming_t(k1, input_size, hidden_size)
        self.fc2_w_t = kaiming_t(k2, hidden_size, output_size)
        self.fc1_root_w_t = kaiming_t(k3, input_size, hidden_size)
        self.fc2_root_w_t = kaiming_t(k4, hidden_size, output_size)

        # Zero-pad once at init: hidden -> 128 lanes (full-vreg h/ReLU/dropout,
        # MXU-aligned matmuls) and out -> 128 lanes (lane-dense output store).
        h_pad = self.hidden_pad - hidden_size
        o_pad = self.out_pad - output_size
        self.fc1_w_t_pad = jnp.pad(self.fc1_w_t, ((0, 0), (0, h_pad)))
        self.fc2_w_t_pad = jnp.pad(self.fc2_w_t, ((0, h_pad), (0, o_pad)))
        self.fc1_root_w_t_pad = jnp.pad(self.fc1_root_w_t, ((0, 0), (0, h_pad)))
        self.fc2_root_w_t_pad = jnp.pad(self.fc2_root_w_t, ((0, h_pad), (0, o_pad)))

    def __call__(self, batch_tensor, deep, *, training=False, dropout_seed=0):
        # `deep` is a Python int in the PyTorch module -> resolve branch here.
        if deep != 0:
            w1, w2 = self.fc1_w_t_pad, self.fc2_w_t_pad
        else:
            w1, w2 = self.fc1_root_w_t_pad, self.fc2_root_w_t_pad
        if training:
            key = jax.random.PRNGKey(dropout_seed)
            return _forward_train(
                batch_tensor, w1, w2, key, output_size=self.output_size
            )
        return _forward_eval(batch_tensor, w1, w2, output_size=self.output_size)


def _reference_eval(x, w1_t, w2_t):
    # fc1 -> ReLU -> (dropout = identity in eval) -> fc2
    return jnp.maximum(x @ w1_t, 0.0) @ w2_t


if __name__ == "__main__":
    key = jax.random.PRNGKey(0)
    k_x, k_x2, k_params = jax.random.split(key, 3)

    batch, input_size, hidden_size, output_size = 8, 16, 32, 4
    model = ClassificationGmPallas(input_size, hidden_size, output_size, k_params)

    x = jax.random.normal(k_x, (batch, input_size), jnp.float32)

    # eval, deep != 0 (main weights)
    out_main = jax.block_until_ready(model(x, deep=1))
    ref_main = _reference_eval(x, model.fc1_w_t, model.fc2_w_t)
    assert out_main.shape == (batch, output_size)
    assert jnp.allclose(out_main, ref_main, atol=1e-5, rtol=1e-5)

    # eval, deep == 0 (root weights)
    out_root = jax.block_until_ready(model(x, deep=0))
    ref_root = _reference_eval(x, model.fc1_root_w_t, model.fc2_root_w_t)
    assert out_root.shape == (batch, output_size)
    assert jnp.allclose(out_root, ref_root, atol=1e-5, rtol=1e-5)

    # larger batch exercises the batch grid (3 tiles, partial boundary block)
    big_batch = 2050
    x_big = jax.random.normal(k_x2, (big_batch, input_size), jnp.float32)
    out_big = jax.block_until_ready(model(x_big, deep=1))
    ref_big = _reference_eval(x_big, model.fc1_w_t, model.fc2_w_t)
    assert out_big.shape == (big_batch, output_size)
    assert jnp.allclose(out_big, ref_big, atol=1e-5, rtol=1e-5)

    # training mode: dropout mask is generated deterministically from the seed,
    # so the fused kernel can be checked exactly against a pure-JAX reference.
    seed = 123
    out_train = jax.block_until_ready(
        model(x, deep=1, training=True, dropout_seed=seed)
    )
    keep = jax.random.bernoulli(
        jax.random.PRNGKey(seed), 1.0 - _DROPOUT_P, (batch, model.hidden_pad)
    )
    mask = keep.astype(jnp.float32) * jnp.float32(_DROP_SCALE)
    ref_train = (
        jnp.maximum(x @ model.fc1_w_t_pad, 0.0) * mask
    ) @ model.fc2_w_t_pad
    ref_train = ref_train[:, :output_size]
    assert out_train.shape == (batch, output_size)
    assert bool(jnp.all(jnp.isfinite(out_train)))
    assert jnp.allclose(out_train, ref_train, atol=1e-5, rtol=1e-5)

    print("KERNEL_OK")
</pallas_src>

<mosaic_0001>
module attributes {stable_mosaic.version = 11 : i64} {
  func.func @_mlp_relu_kernel(%arg0: i32, %arg1: memref<8x16xf32, #tpu.memory_space<vmem>>, %arg2: memref<16x128xf32, #tpu.memory_space<vmem>>, %arg3: memref<128x128xf32, #tpu.memory_space<vmem>>, %arg4: memref<8x128xf32, #tpu.memory_space<vmem>>) attributes {dimension_semantics = [#tpu.dimension_semantics<parallel>], iteration_bounds = array<i64: 1>, scalar_prefetch = 0 : i64, scratch_operands = 0 : i64, tpu.core_type = #tpu.core_type<tc>, window_params = [{transform_indices = @transform_0, window_bounds = array<i64: 8, 16>}, {pipeline_mode = #tpu.pipeline_mode<synchronous>, transform_indices = @transform_1, window_bounds = array<i64: 16, 128>}, {pipeline_mode = #tpu.pipeline_mode<synchronous>, transform_indices = @transform_2, window_bounds = array<i64: 128, 128>}, {transform_indices = @transform_3, window_bounds = array<i64: 8, 128>}]} {
    %c0 = arith.constant 0 : index
    %c0_0 = arith.constant 0 : index
    %0 = vector.load %arg1[%c0, %c0_0] : memref<8x16xf32, #tpu.memory_space<vmem>>, vector<8x16xf32>
    %c0_1 = arith.constant 0 : index
    %c0_2 = arith.constant 0 : index
    %1 = vector.load %arg2[%c0_1, %c0_2] : memref<16x128xf32, #tpu.memory_space<vmem>>, vector<16x128xf32>
    %cst = arith.constant dense<0.000000e+00> : vector<8x128xf32>
    %2 = tpu.matmul %0, %1, %cst {dimension_numbers = #tpu.dot_dimension_numbers<[1], [0], [0], [1], [0, 0, 1, 1], [], []>} : vector<8x16xf32>, vector<16x128xf32>, vector<8x128xf32> -> vector<8x128xf32>
    %cst_3 = arith.constant 0.000000e+00 : f32
    %3 = vector.broadcast %cst_3 : f32 to vector<8x128xf32>
    %4 = arith.maximumf %2, %3 : vector<8x128xf32>
    %c0_4 = arith.constant 0 : index
    %c0_5 = arith.constant 0 : index
    %5 = vector.load %arg3[%c0_4, %c0_5] : memref<128x128xf32, #tpu.memory_space<vmem>>, vector<128x128xf32>
    %cst_6 = arith.constant dense<0.000000e+00> : vector<8x128xf32>
    %6 = tpu.matmul %4, %5, %cst_6 {dimension_numbers = #tpu.dot_dimension_numbers<[1], [0], [0], [1], [0, 0, 1, 1], [], []>} : vector<8x128xf32>, vector<128x128xf32>, vector<8x128xf32> -> vector<8x128xf32>
    %c0_7 = arith.constant 0 : index
    %c0_8 = arith.constant 0 : index
    %7 = vector.load %arg4[%c0_7, %c0_8] : memref<8x128xf32, #tpu.memory_space<vmem>>, vector<8x128xf32>
    tpu.vector_store %arg4[%c0_7, %c0_8], %6 {strides = array<i32>} : memref<8x128xf32, #tpu.memory_space<vmem>>, vector<8x128xf32>,
    return
  }
  func.func @transform_0(%arg0: i32) -> (i32, i32) {
    %c0_i32 = arith.constant 0 : i32
    %c0_i32_0 = arith.constant 0 : i32
    return %arg0, %c0_i32 : i32, i32
  }
  func.func @transform_1(%arg0: i32) -> (i32, i32) {
    %c0_i32 = arith.constant 0 : i32
    %c0_i32_0 = arith.constant 0 : i32
    %c0_i32_1 = arith.constant 0 : i32
    return %c0_i32, %c0_i32_0 : i32, i32
  }
  func.func @transform_2(%arg0: i32) -> (i32, i32) {
    %c0_i32 = arith.constant 0 : i32
    %c0_i32_0 = arith.constant 0 : i32
    %c0_i32_1 = arith.constant 0 : i32
    return %c0_i32, %c0_i32_0 : i32, i32
  }
  func.func @transform_3(%arg0: i32) -> (i32, i32) {
    %c0_i32 = arith.constant 0 : i32
    %c0_i32_0 = arith.constant 0 : i32
    return %arg0, %c0_i32 : i32, i32
  }
}

</mosaic_0001>

<llo_original>
// kernel: _forward_eval.1
$region0: #{_forward_eval.1}
  #allocation0 [shape = 'u32[]', space=smem, size = 0x4, offset = 0x4, fixed_abs, tag = 'smem constant byte address 0x4 - core index']
  #allocation1 [shape = 'u32[144,128]{1,0:T(1,128)}', space=vmem, size = 0x12000, scoped, tag = 'internal scratch']
  %s0 = inlined_call_operand.hbm [shape: f32[8,16], index: 0, kind: input, shape index: {}]
  %s1 = inlined_call_operand.hbm [shape: f32[16,128], index: 1, kind: input, shape index: {}]
  %s2 = inlined_call_operand.hbm [shape: f32[128,128], index: 2, kind: input, shape index: {}]
  %s3 = inlined_call_operand.vmem [shape: f32[8,128], index: 3, kind: output, shape index: {}]
  %s4 = sld [smem:[#allocation0]]
  $region34: #{_forward_eval.1} parent=0
    _
  %s6 = ssub.s32 1, %s4
  %s7 = scalar_select 0, %s6, %s4
  $region1: #{_forward_eval.1} parent=0
    #allocation2 [shape = 'u8[4096]{0}', space=vmem, size = 0x1000, scoped, tag = 'input window, operand 0, single buffered']
    #allocation3 [shape = 's32[1]{0}', space=sflag, size = 0x4, scoped, tag = 'scoped memory for _forward_eval.1']
    #allocation4 [shape = 'u8[8192]{0}', space=vmem, size = 0x2000, scoped, tag = 'input window, operand 1, single buffered']
    #allocation5 [shape = 's32[1]{0}', space=sflag, size = 0x4, scoped, tag = 'scoped memory for _forward_eval.1']
    #allocation6 [shape = 'u8[65536]{0}', space=vmem, size = 0x10000, scoped, tag = 'input window, operand 2, single buffered']
    %8 = vsyncpa [#allocation3], 0
    %9 = vsyncpa [#allocation5], 0
    // Predicated region
    $region2: #{_forward_eval.1} parent=1 // pred_check
      _
    $region3: #{_forward_eval.1} parent=1 // pred_check_branch
      %11 = sbr.rel (0) target = $region5
    $region4: #{_forward_eval.1} parent=1 // pred_region
      %s13 = ssub.s32 128, 128
      %14 = vsyncadd [#allocation3], %s13
      %s16 = sshll.u32 [#allocation2], 4
      %s17 = int_to_ptr.vmem [resolvable:$true] %s16
      %19 = dma.hbm_to_vmem [thread:$0]  %s0, 128, %s17, [#allocation3]
    $region5: #{_forward_eval.1} parent=1 // pred_fallthru
      _
    // Predicated region
    $region6: #{_forward_eval.1} parent=1 // pred_check
      _
    $region7: #{_forward_eval.1} parent=1 // pred_check_branch
      %21 = sbr.rel (0) target = $region9
    $region8: #{_forward_eval.1} parent=1 // pred_region
      %s23 = ssub.s32 256, 256
      %24 = vsyncadd [#allocation5], %s23
      %s25 = sshll.u32 [#allocation4], 4
      %s26 = int_to_ptr.vmem [resolvable:$true] %s25
      %31 = dma.hbm_to_vmem [thread:$0]  %s1, 256, %s26, [#allocation5], 128, 128, 8
    $region9: #{_forward_eval.1} parent=1 // pred_fallthru
      _
    // Predicated region
    $region10: #{_forward_eval.1} parent=1 // pred_check
      _
    $region11: #{_forward_eval.1} parent=1 // pred_check_branch
      %33 = sbr.rel (0) target = $region13
    $region12: #{_forward_eval.1} parent=1 // pred_region
      %s35 = ssub.s32 2048, 2048
      %36 = vsyncadd [#allocation5], %s35
      %s37 = sshll.u32 [#allocation6], 4
      %s38 = int_to_ptr.vmem [resolvable:$true] %s37
      %43 = dma.hbm_to_vmem [thread:$0]  %s2, 2048, %s38, [#allocation5], 128, 128, 8
    $region13: #{_forward_eval.1} parent=1 // pred_fallthru
      _
    // Predicated region
    $region14: #{_forward_eval.1} parent=1 // pred_check
      _
    $region15: #{_forward_eval.1} parent=1 // pred_check_branch
      %45 = sbr.rel (0) target = $region17
    $region16: #{_forward_eval.1} parent=1 // pred_region
      %46 = dma.done [#allocation3], 128
    $region17: #{_forward_eval.1} parent=1 // pred_fallthru
      _
    // Predicated region
    $region18: #{_forward_eval.1} parent=1 // pred_check
      _
    $region19: #{_forward_eval.1} parent=1 // pred_check_branch
      %48 = sbr.rel (0) target = $region21
    $region20: #{_forward_eval.1} parent=1 // pred_region
      %49 = dma.done [#allocation5], 256
    $region21: #{_forward_eval.1} parent=1 // pred_fallthru
      _
    // Predicated region
    $region22: #{_forward_eval.1} parent=1 // pred_check
      _
    $region23: #{_forward_eval.1} parent=1 // pred_check_branch
      %51 = sbr.rel (0) target = $region25
    $region24: #{_forward_eval.1} parent=1 // pred_region
      %52 = dma.done [#allocation5], 2048
    $region25: #{_forward_eval.1} parent=1 // pred_fallthru
      _
    %v53 = vld [vmem:[#allocation2] sm:$0xff]
    %v54 = vld [vmem:[#allocation4] sm:$0xff]
    %v55 = vld [vmem:[#allocation4 + $0x8] sm:$0xff]
    %vm56 = vcmask 130048
    %v58 = vsel %vm56, %v53, 0
    %60 = vmatprep.subr.mxu0 0.0
    %61 = vmatpush1.msra.mxu0 %v54
    %62 = vmatprep.subr.mxu0 0.0
    %63 = vmatpush1.msra.mxu0 %v55
    %64 = vmatprep.subr.mxu0 0.0
    %65 = vmatpush1.msra.mxu0 0.0
    %66 = vmatprep.subr.mxu0 0.0
    %67 = vmatpush1.msra.mxu0 0.0
    %68 = vmatprep.subr.mxu0 0.0
    %69 = vmatpush1.msra.mxu0 0.0
    %70 = vmatprep.subr.mxu0 0.0
    %71 = vmatpush1.msra.mxu0 0.0
    %72 = vmatprep.subr.mxu0 0.0
    %73 = vmatpush1.msra.mxu0 0.0
    %74 = vmatprep.subr.mxu0 0.0
    %75 = vmatpush1.msra.mxu0 0.0
    %76 = vmatprep.subr.mxu0 0.0
    %77 = vmatpush1.msra.mxu0 0.0
    %78 = vmatprep.subr.mxu0 0.0
    %79 = vmatpush1.msra.mxu0 0.0
    %80 = vmatprep.subr.mxu0 0.0
    %81 = vmatpush1.msra.mxu0 0.0
    %82 = vmatprep.subr.mxu0 0.0
    %83 = vmatpush1.msra.mxu0 0.0
    %84 = vmatprep.subr.mxu0 0.0
    %85 = vmatpush1.msra.mxu0 0.0
    %86 = vmatprep.subr.mxu0 0.0
    %87 = vmatpush1.msra.mxu0 0.0
    %88 = vmatprep.subr.mxu0 0.0
    %89 = vmatpush1.msra.mxu0 0.0
    %90 = vmatprep.subr.mxu0 0.0
    %91 = vmatpush1.msra.mxu0 0.0
    %92 = vmatprep.subr.mxu0 0.0
    %93 = vmatpush1.msra.mxu0 0.0
    %94 = vmatprep.subr.mxu0 0.0
    %95 = vmatpush1.msra.mxu0 0.0
    %96 = vmatprep.subr.mxu0 0.0
    %97 = vmatpush1.msra.mxu0 0.0
    %98 = vmatprep.subr.mxu0 0.0
    %99 = vmatpush1.msra.mxu0 0.0
    %100 = vmatprep.subr.mxu0 0.0
    %101 = vmatpush1.msra.mxu0 0.0
    %102 = vmatprep.subr.mxu0 0.0
    %103 = vmatpush1.msra.mxu0 0.0
    %104 = vmatprep.subr.mxu0 0.0
    %105 = vmatpush1.msra.mxu0 0.0
    %106 = vmatprep.subr.mxu0 0.0
    %107 = vmatpush1.msra.mxu0 0.0
    %108 = vmatprep.subr.mxu0 0.0
    %109 = vmatpush1.msra.mxu0 0.0
    %110 = vmatprep.subr.mxu0 0.0
    %111 = vmatpush1.msra.mxu0 0.0
    %112 = vmatprep.subr.mxu0 0.0
    %113 = vmatpush1.msra.mxu0 0.0
    %114 = vmatprep.subr.mxu0 0.0
    %115 = vmatpush1.msra.mxu0 0.0
    %116 = vmatprep.subr.mxu0 0.0
    %117 = vmatpush1.msra.mxu0 0.0
    %118 = vmatprep.subr.mxu0 0.0
    %119 = vmatpush1.msra.mxu0 0.0
    %120 = vmatprep.subr.mxu0 0.0
    %121 = vmatpush1.msra.mxu0 0.0
    %122 = vmatprep.subr.mxu0 0.0
    %123 = vmatpush1.msra.mxu0 0.0
    %124 = vmatprep.mubr.f32.mxu0 0.0
    %125 = vmatmul.mubr.f32.gmra.mrb[0].mxu0 %v58
    %v126 = vpop.f32.mrb[0].mxu0
    %v127 = vadd.f32 0.0, %v126
    %v128 = vpop.f32.mrb[0].mxu0
    %129 = vdwg.mxu0
    %v130 = vmax.f32 %v127, 0.0
    %v131 = vld [vmem:[#allocation6] sm:$0xff]
    %v132 = vld [vmem:[#allocation6 + $0x8] sm:$0xff]
    %v133 = vld [vmem:[#allocation6 + $0x10] sm:$0xff]
    %v134 = vld [vmem:[#allocation6 + $0x18] sm:$0xff]
    %v135 = vld [vmem:[#allocation6 + $0x20] sm:$0xff]
    %v136 = vld [vmem:[#allocation6 + $0x28] sm:$0xff]
    %v137 = vld [vmem:[#allocation6 + $0x30] sm:$0xff]
    %v138 = vld [vmem:[#allocation6 + $0x38] sm:$0xff]
    %v139 = vld [vmem:[#allocation6 + $0x40] sm:$0xff]
    %v140 = vld [vmem:[#allocation6 + $0x48] sm:$0xff]
    %v141 = vld [vmem:[#allocation6 + $0x50] sm:$0xff]
    %v142 = vld [vmem:[#allocation6 + $0x58] sm:$0xff]
    %v143 = vld [vmem:[#allocation6 + $0x60] sm:$0xff]
    %v144 = vld [vmem:[#allocation6 + $0x68] sm:$0xff]
    %v145 = vld [vmem:[#allocation6 + $0x70] sm:$0xff]
    %v146 = vld [vmem:[#allocation6 + $0x78] sm:$0xff]
    %147 = vmatprep.subr.mxu0 0.0
    %148 = vmatpush1.msra.mxu0 %v131
    %149 = vmatprep.subr.mxu0 0.0
    %150 = vmatpush1.msra.mxu0 %v132
    %151 = vmatprep.subr.mxu0 0.0
    %152 = vmatpush1.msra.mxu0 %v133
    %153 = vmatprep.subr.mxu0 0.0
    %154 = vmatpush1.msra.mxu0 %v134
    %155 = vmatprep.subr.mxu0 0.0
    %156 = vmatpush1.msra.mxu0 %v135
    %157 = vmatprep.subr.mxu0 0.0
    %158 = vmatpush1.msra.mxu0 %v136
    %159 = vmatprep.subr.mxu0 0.0
    %160 = vmatpush1.msra.mxu0 %v137
    %161 = vmatprep.subr.mxu0 0.0
    %162 = vmatpush1.msra.mxu0 %v138
    %163 = vmatprep.subr.mxu0 0.0
    %164 = vmatpush1.msra.mxu0 %v139
    %165 = vmatprep.subr.mxu0 0.0
    %166 = vmatpush1.msra.mxu0 %v140
    %167 = vmatprep.subr.mxu0 0.0
    %168 = vmatpush1.msra.mxu0 %v141
    %169 = vmatprep.subr.mxu0 0.0
    %170 = vmatpush1.msra.mxu0 %v142
    %171 = vmatprep.subr.mxu0 0.0
    %172 = vmatpush1.msra.mxu0 %v143
    %173 = vmatprep.subr.mxu0 0.0
    %174 = vmatpush1.msra.mxu0 %v144
    %175 = vmatprep.subr.mxu0 0.0
    %176 = vmatpush1.msra.mxu0 %v145
    %177 = vmatprep.subr.mxu0 0.0
    %178 = vmatpush1.msra.mxu0 %v146
    %179 = vmatprep.subr.mxu0 0.0
    %180 = vmatpush1.msra.mxu0 0.0
    %181 = vmatprep.subr.mxu0 0.0
    %182 = vmatpush1.msra.mxu0 0.0
    %183 = vmatprep.subr.mxu0 0.0
    %184 = vmatpush1.msra.mxu0 0.0
    %185 = vmatprep.subr.mxu0 0.0
    %186 = vmatpush1.msra.mxu0 0.0
    %187 = vmatprep.subr.mxu0 0.0
    %188 = vmatpush1.msra.mxu0 0.0
    %189 = vmatprep.subr.mxu0 0.0
    %190 = vmatpush1.msra.mxu0 0.0
    %191 = vmatprep.subr.mxu0 0.0
    %192 = vmatpush1.msra.mxu0 0.0
    %193 = vmatprep.subr.mxu0 0.0
    %194 = vmatpush1.msra.mxu0 0.0
    %195 = vmatprep.subr.mxu0 0.0
    %196 = vmatpush1.msra.mxu0 0.0
    %197 = vmatprep.subr.mxu0 0.0
    %198 = vmatpush1.msra.mxu0 0.0
    %199 = vmatprep.subr.mxu0 0.0
    %200 = vmatpush1.msra.mxu0 0.0
    %201 = vmatprep.subr.mxu0 0.0
    %202 = vmatpush1.msra.mxu0 0.0
    %203 = vmatprep.subr.mxu0 0.0
    %204 = vmatpush1.msra.mxu0 0.0
    %205 = vmatprep.subr.mxu0 0.0
    %206 = vmatpush1.msra.mxu0 0.0
    %207 = vmatprep.subr.mxu0 0.0
    %208 = vmatpush1.msra.mxu0 0.0
    %209 = vmatprep.subr.mxu0 0.0
    %210 = vmatpush1.msra.mxu0 0.0
    %211 = vmatprep.mubr.f32.mxu0 0.0
    %212 = vmatmul.mubr.f32.gmra.mrb[0].mxu0 %v130
    %v213 = vpop.f32.mrb[0].mxu0
    %v214 = vadd.f32 0.0, %v213
    %v215 = vpop.f32.mrb[0].mxu0
    %216 = vdwg.mxu0
    %217 = vst [vmem:[%s3] sm:$0xff] %v214
    // Predicated region
    $region26: #{_forward_eval.1} parent=1 // pred_check
      _
    $region27: #{_forward_eval.1} parent=1 // pred_check_branch
      %219 = sbr.rel (0) target = $region29
    $region28: #{_forward_eval.1} parent=1 // pred_region
      _
    $region29: #{_forward_eval.1} parent=1 // pred_fallthru
      _
    // Predicated region
    $region30: #{_forward_eval.1} parent=1 // pred_check
      _
    $region31: #{_forward_eval.1} parent=1 // pred_check_branch
      %221 = sbr.rel (0) target = $region33
    $region32: #{_forward_eval.1} parent=1 // pred_region
      _
    $region33: #{_forward_eval.1} parent=1 // pred_fallthru
      _
    %222 = vsyncpa [#allocation3], 1
    %223 = vsyncpa [#allocation5], 1

</llo_original>
